<compile_context>
chip_gen: v7x
topology: tpu7x:2x2x1
jax: 0.10.0
libtpu: 0.0.40
codegen_flags: <defaults>
</compile_context>

<pallas_src>
import numpy as np
import jax
import jax.numpy as jnp
from jax.experimental import pallas as pl
from jax.experimental.pallas import tpu as pltpu

RHO = 100.0                  # GMoF robustifier rho
BODY_POSE_WEIGHT = 1.0       # constructor arg body_pose_weight
SHAPE_WEIGHT = 0.5           # constructor arg shape_weight
BENDING_PRIOR_WEIGHT = 0.25  # constructor arg (see TODO in kernel)
LANE = 128
# NOTE: data_weight is registered in the PyTorch module but never used in
# forward() (the 1500.0 factor is hard-coded there), so it is omitted.

LANDMARK_NAMES = ['leftEye', 'rightEye', 'chin', 'frontLeftFoot',
    'frontRightFoot', 'backLeftFoot', 'backRightFoot', 'tailStart',
    'frontLeftKnee', 'backLeftKnee', 'backRightKnee', 'leftShoulder',
    'rightShoulder', 'frontLeftAnkle', 'frontRightAnkle', 'backLeftAnkle',
    'backRightAnkle', 'neck', 'TailTip', 'leftEar', 'rightEar',
    'nostrilLeft', 'nostrilRight', 'mouthLeft', 'mouthRight', 'cheekLeft',
    'cheekRight', 'mane', 'back', 'croup']


def smplify_loss_kernel(cam_ref, verts_ref, assign_ref, kp_ref,
                        pose_ref, betas_ref, out_ref):
    C = verts_ref.shape[0]
    rho2 = jnp.float32(RHO * RHO)
    joint_loss = jnp.float32(0.0)

    for c in range(C):          # static unroll, C is small and known at trace time
        # camera scalars from SMEM -> free scalar-slot reads, no lane slicing
        fx = cam_ref[c, 0]
        fy = cam_ref[c, 1]
        cx = cam_ref[c, 2]
        cy = cam_ref[c, 3]
        tx = cam_ref[c, 4]
        ty = cam_ref[c, 5]
        tz = cam_ref[c, 6]
        inv_sqrt_np = cam_ref[c, 7]          # 1 / sqrt(num_points)

        # TODO(synk): reference `camera` is an opaque module; a synthetic
        # perspective camera (translate -> pinhole project) is used instead.
        v = verts_ref[c]                                      # (3, Vp)
        inv_z = pl.reciprocal(v[2:3, :] + tz, approx=True)    # EUP, (1, Vp)
        px = fx * (v[0:1, :] + tx) * inv_z + cx
        py = fy * (v[1:2, :] + ty) * inv_z + cy
        proj = jnp.concatenate([px, py], axis=0)              # (2, Vp)

        # group-mean of key vertices per landmark: (2, Vp) @ (Vp, Pp) -> (2, Pp)
        proj_kp = jnp.dot(proj, assign_ref[c],
                          preferred_element_type=jnp.float32)

        kd = kp_ref[c]                                        # (3, Pp)
        diff = proj_kp - kd[0:2, :]
        sq = diff * diff
        rob = rho2 * sq * pl.reciprocal(sq + rho2, approx=True)   # GMoF

        w = kd[2:3, :]                                        # keypoint weights
        # joint_loss = sum((1500 * w * sqrt(rob + 1e-8) / sqrt(P))^2) with the
        # sqrt/square pair cancelled algebraically (padded rows have w == 0).
        scale = jnp.float32(1500.0) * inv_sqrt_np
        scale = scale * scale
        joint_loss += scale * jnp.sum((w * w) * (rob + jnp.float32(1e-8)))

    # TODO(synk): body_pose_prior / shape_prior modules are not provided;
    # synthetic L2 (sum-of-squares) priors are used deterministically.
    # The reference adds the priors inside its per-camera loop (C times),
    # so they are computed once here and scaled by C.
    pose = pose_ref[...]
    bet = betas_ref[...]
    pprior_loss = jnp.sum(pose * pose) * jnp.float32(BODY_POSE_WEIGHT ** 2)
    shape_loss = jnp.sum(bet * bet) * jnp.float32(SHAPE_WEIGHT ** 2)

    # TODO(synk): angle_prior_loss is computed but never added to total_loss
    # in the reference forward(), so it is intentionally not accumulated here.

    total = joint_loss + jnp.float32(C) * (pprior_loss + shape_loss)
    out_ref[...] = jnp.full((1, 1), total, dtype=jnp.float32)


def _pad_lanes(x, lane=LANE):
    pad = lane - x.shape[-1]
    if pad > 0:
        x = jnp.pad(x, [(0, 0)] * (x.ndim - 1) + [(0, pad)])
    return x


def smplify_loss(cam_params, verts_sel_t, assign_t, kp_data, body_pose, betas):
    C, _, Vp = verts_sel_t.shape
    Pp = assign_t.shape[2]
    pose_p = _pad_lanes(body_pose.astype(jnp.float32))
    betas_p = _pad_lanes(betas.astype(jnp.float32))
    out = pl.pallas_call(
        smplify_loss_kernel,
        out_shape=jax.ShapeDtypeStruct((1, 1), jnp.float32),
        grid_spec=pltpu.PrefetchScalarGridSpec(
            num_scalar_prefetch=0,
            grid=(1,),
            in_specs=[
                # camera scalars -> SMEM (whole array, no blocking)
                pl.BlockSpec(memory_space=pltpu.MemorySpace.SMEM),
                pl.BlockSpec((C, 3, Vp), lambda i: (0, 0, 0)),
                pl.BlockSpec((C, Vp, Pp), lambda i: (0, 0, 0)),
                pl.BlockSpec((C, 3, Pp), lambda i: (0, 0, 0)),
                pl.BlockSpec((1, LANE), lambda i: (0, 0)),
                pl.BlockSpec((1, LANE), lambda i: (0, 0)),
            ],
            out_specs=pl.BlockSpec((1, 1), lambda i: (0, 0)),
        ),
        compiler_params=pltpu.CompilerParams(
            dimension_semantics=("arbitrary",)),
    )(cam_params, verts_sel_t, assign_t, kp_data, pose_p, betas_p)
    return out.reshape((1,))   # PyTorch returns a shape-(1,) tensor


def prepare_camera_inputs(gt_joints_np, joints_conf_np, key_vids, P_pad, V_pad):
    """Host-side numpy preprocessing, mirrors the reference forward()."""
    L = gt_joints_np.shape[2]
    kp_base = np.ones((L,), np.float32)
    kp_base[LANDMARK_NAMES.index('mane')] *= 2.0
    kp_base[LANDMARK_NAMES.index('leftEye')] *= 0.5
    kp_base[LANDMARK_NAMES.index('rightEye')] *= 0.5
    kp_base[LANDMARK_NAMES.index('leftEar')] *= 0.5
    kp_base[LANDMARK_NAMES.index('leftEar')] *= 0.5   # applied twice, as in ref
    kp_base[LANDMARK_NAMES.index('nostrilLeft')] *= 0.5
    kp_base[LANDMARK_NAMES.index('nostrilRight')] *= 0.5
    kp_base[LANDMARK_NAMES.index('mouthLeft')] *= 0.5
    kp_base[LANDMARK_NAMES.index('mouthRight')] *= 0.5

    C = gt_joints_np.shape[0]
    A_all, kp_all, vids_all, inv_all = [], [], [], []
    for c in range(C):
        lm = np.hstack([gt_joints_np[c][0], joints_conf_np[c].T])   # (L, 3)
        visible = lm[:, 2].astype(bool)
        use_ids = [i for i in range(L) if visible[i]]
        visible_vids = np.hstack(
            [key_vids[0][i] for i in use_ids]).astype(np.int32)
        group = np.hstack([k * np.ones(len(key_vids[0][r]))
                           for k, r in enumerate(use_ids)])
        assignments = np.vstack([group == j
                                 for j in np.arange(group[-1] + 1)])
        num_points = len(use_ids)
        A = assignments.astype(np.float32)
        A = A / A.sum(axis=1, keepdims=True)           # group-mean weights
        nv = visible_vids.shape[0]

        A_t = np.zeros((V_pad, P_pad), np.float32)     # transposed, lane-dense
        A_t[:nv, :num_points] = A.T
        kp = np.zeros((3, P_pad), np.float32)          # rows 0-1 = j2d, row 2 = weight
        kp[0:2, :num_points] = lm[use_ids, :2].T
        kp[2, :num_points] = kp_base[use_ids]
        vids_pad = np.zeros((V_pad,), np.int32)
        vids_pad[:nv] = visible_vids

        A_all.append(A_t)
        kp_all.append(kp)
        vids_all.append(vids_pad)
        inv_all.append(1.0 / np.sqrt(num_points))
    return (np.stack(A_all), np.stack(kp_all), np.stack(vids_all),
            np.array(inv_all, np.float32))


if __name__ == "__main__":
    key = jax.random.PRNGKey(0)
    k1, k2, k3, k4 = jax.random.split(key, 4)

    C = 2            # number of cameras
    L = 30           # landmarks
    NV = 256         # mesh vertices
    NPOSE = 63
    NB = 10
    P_pad, V_pad = LANE, LANE   # keypoint / key-vertex axes padded to lane width

    # synthetic key_vids: landmark i -> 1..3 deterministic mesh vertex ids
    key_vids = [[np.array([(7 * i + 3 * j) % NV for j in range(1 + i % 3)],
                          dtype=np.int32) for i in range(L)]]

    vertices = jax.random.normal(k1, (1, NV, 3), jnp.float32) * 0.5
    body_pose = jax.random.normal(k2, (1, NPOSE), jnp.float32) * 0.1
    betas = jax.random.normal(k3, (1, NB), jnp.float32) * 0.3
    gt_xy = jax.random.uniform(k4, (C, 1, L, 2), jnp.float32, 0.0, 256.0)
    joints_conf = jnp.ones((C, 1, L), jnp.float32)   # all keypoints visible

    gt_np = np.asarray(gt_xy)
    conf_np = np.asarray(joints_conf)
    A_t, kp_data, vids, inv_sqrt_np = prepare_camera_inputs(
        gt_np, conf_np, key_vids, P_pad, V_pad)

    # deterministic per-camera synthetic perspective cameras
    cam_params = np.zeros((C, 8), np.float32)
    for c in range(C):
        cam_params[c] = [500.0, 500.0, 128.0, 128.0,
                         0.1 * (c + 1), -0.05 * (c + 1), 10.0 + c,
                         inv_sqrt_np[c]]

    # gather visible key vertices per camera (glue in plain JAX), lane-dense
    verts_sel = jnp.stack([vertices[0, vids[c]].T for c in range(C)], axis=0)

    total = smplify_loss(jnp.asarray(cam_params), verts_sel, jnp.asarray(A_t),
                         jnp.asarray(kp_data), body_pose, betas)
    total = jax.block_until_ready(total)

    # ---- pure numpy reference (original sqrt/square formulation) ----
    verts_np = np.asarray(vertices, np.float64)
    pose_np = np.asarray(body_pose, np.float64)
    betas_np = np.asarray(betas, np.float64)
    ref = 0.0
    for c in range(C):
        fx, fy, cx, cy, tx, ty, tz, isn = cam_params[c].astype(np.float64)
        vs = verts_np[0, vids[c]] + np.array([tx, ty, tz])
        proj = np.stack([fx * vs[:, 0] / vs[:, 2] + cx,
                         fy * vs[:, 1] / vs[:, 2] + cy], axis=-1)   # (Vp, 2)
        proj_kp = A_t[c].T.astype(np.float64) @ proj                # (Pp, 2)
        diff = proj_kp - kp_data[c, 0:2, :].T
        sq = diff * diff
        rob = RHO * RHO * sq / (sq + RHO * RHO)
        kpw = kp_data[c, 2, :][:, None]
        kp = 1500.0 * kpw * np.sqrt(rob + 1e-8) * isn
        ref += np.sum(kp * kp)
        ref += np.sum(pose_np ** 2) * BODY_POSE_WEIGHT ** 2
        ref += np.sum(betas_np ** 2) * SHAPE_WEIGHT ** 2

    np.testing.assert_allclose(np.asarray(total)[0], ref, rtol=5e-3)
    print("KERNEL_OK")
</pallas_src>

<mosaic_0001>
module attributes {stable_mosaic.version = 11 : i64} {
  func.func @smplify_loss_kernel(%arg0: i32, %arg1: memref<2x8xf32, #tpu.memory_space<smem>>, %arg2: memref<2x3x128xf32, #tpu.memory_space<vmem>>, %arg3: memref<2x128x128xf32, #tpu.memory_space<vmem>>, %arg4: memref<2x3x128xf32, #tpu.memory_space<vmem>>, %arg5: memref<1x128xf32, #tpu.memory_space<vmem>>, %arg6: memref<1x128xf32, #tpu.memory_space<vmem>>, %arg7: memref<1x1xf32, #tpu.memory_space<vmem>>) attributes {dimension_semantics = [#tpu.dimension_semantics<arbitrary>], iteration_bounds = array<i64: 1>, scalar_prefetch = 0 : i64, scratch_operands = 0 : i64, tpu.core_type = #tpu.core_type<tc>, window_params = [{transform_indices = @transform_0, window_bounds = array<i64: 2, 8>}, {pipeline_mode = #tpu.pipeline_mode<synchronous>, transform_indices = @transform_1, window_bounds = array<i64: 2, 3, 128>}, {pipeline_mode = #tpu.pipeline_mode<synchronous>, transform_indices = @transform_2, window_bounds = array<i64: 2, 128, 128>}, {pipeline_mode = #tpu.pipeline_mode<synchronous>, transform_indices = @transform_3, window_bounds = array<i64: 2, 3, 128>}, {pipeline_mode = #tpu.pipeline_mode<synchronous>, transform_indices = @transform_4, window_bounds = array<i64: 1, 128>}, {pipeline_mode = #tpu.pipeline_mode<synchronous>, transform_indices = @transform_5, window_bounds = array<i64: 1, 128>}, {pipeline_mode = #tpu.pipeline_mode<synchronous>, transform_indices = @transform_6, window_bounds = array<i64: 1, 1>}]} {
    %c0 = arith.constant 0 : index
    %c0_0 = arith.constant 0 : index
    %0 = memref.load %arg1[%c0, %c0_0] : memref<2x8xf32, #tpu.memory_space<smem>>
    %c0_1 = arith.constant 0 : index
    %c1 = arith.constant 1 : index
    %1 = memref.load %arg1[%c0_1, %c1] : memref<2x8xf32, #tpu.memory_space<smem>>
    %c0_2 = arith.constant 0 : index
    %c2 = arith.constant 2 : index
    %2 = memref.load %arg1[%c0_2, %c2] : memref<2x8xf32, #tpu.memory_space<smem>>
    %c0_3 = arith.constant 0 : index
    %c3 = arith.constant 3 : index
    %3 = memref.load %arg1[%c0_3, %c3] : memref<2x8xf32, #tpu.memory_space<smem>>
    %c0_4 = arith.constant 0 : index
    %c4 = arith.constant 4 : index
    %4 = memref.load %arg1[%c0_4, %c4] : memref<2x8xf32, #tpu.memory_space<smem>>
    %c0_5 = arith.constant 0 : index
    %c5 = arith.constant 5 : index
    %5 = memref.load %arg1[%c0_5, %c5] : memref<2x8xf32, #tpu.memory_space<smem>>
    %c0_6 = arith.constant 0 : index
    %c6 = arith.constant 6 : index
    %6 = memref.load %arg1[%c0_6, %c6] : memref<2x8xf32, #tpu.memory_space<smem>>
    %c0_7 = arith.constant 0 : index
    %c7 = arith.constant 7 : index
    %7 = memref.load %arg1[%c0_7, %c7] : memref<2x8xf32, #tpu.memory_space<smem>>
    %c0_8 = arith.constant 0 : index
    %c0_9 = arith.constant 0 : index
    %c0_10 = arith.constant 0 : index
    %8 = vector.load %arg2[%c0_8, %c0_9, %c0_10] : memref<2x3x128xf32, #tpu.memory_space<vmem>>, vector<1x3x128xf32>
    %9 = vector.shape_cast %8 : vector<1x3x128xf32> to vector<3x128xf32>
    %10 = vector.extract_strided_slice %9 {offsets = [2, 0], sizes = [1, 128], strides = [1, 1]} : vector<3x128xf32> to vector<1x128xf32>
    %11 = vector.broadcast %6 : f32 to vector<1x128xf32>
    %12 = arith.addf %10, %11 : vector<1x128xf32>
    %13 = tpu.reciprocal %12 {approx = true} : vector<1x128xf32> -> vector<1x128xf32>
    %14 = vector.extract_strided_slice %9 {offsets = [0, 0], sizes = [1, 128], strides = [1, 1]} : vector<3x128xf32> to vector<1x128xf32>
    %15 = vector.broadcast %4 : f32 to vector<1x128xf32>
    %16 = arith.addf %14, %15 : vector<1x128xf32>
    %17 = vector.broadcast %0 : f32 to vector<1x128xf32>
    %18 = arith.mulf %17, %16 : vector<1x128xf32>
    %19 = arith.mulf %18, %13 : vector<1x128xf32>
    %20 = vector.broadcast %2 : f32 to vector<1x128xf32>
    %21 = arith.addf %19, %20 : vector<1x128xf32>
    %22 = vector.extract_strided_slice %9 {offsets = [1, 0], sizes = [1, 128], strides = [1, 1]} : vector<3x128xf32> to vector<1x128xf32>
    %23 = vector.broadcast %5 : f32 to vector<1x128xf32>
    %24 = arith.addf %22, %23 : vector<1x128xf32>
    %25 = vector.broadcast %1 : f32 to vector<1x128xf32>
    %26 = arith.mulf %25, %24 : vector<1x128xf32>
    %27 = arith.mulf %26, %13 : vector<1x128xf32>
    %28 = vector.broadcast %3 : f32 to vector<1x128xf32>
    %29 = arith.addf %27, %28 : vector<1x128xf32>
    %30 = tpu.concatenate %21, %29 in 0 : vector<1x128xf32>, vector<1x128xf32> -> vector<2x128xf32>
    %c0_11 = arith.constant 0 : index
    %c0_12 = arith.constant 0 : index
    %c0_13 = arith.constant 0 : index
    %31 = vector.load %arg3[%c0_11, %c0_12, %c0_13] : memref<2x128x128xf32, #tpu.memory_space<vmem>>, vector<1x128x128xf32>
    %32 = vector.shape_cast %31 : vector<1x128x128xf32> to vector<128x128xf32>
    %cst = arith.constant dense<0.000000e+00> : vector<2x128xf32>
    %33 = tpu.matmul %30, %32, %cst {dimension_numbers = #tpu.dot_dimension_numbers<[1], [0], [0], [1], [0, 0, 1, 1], [], []>} : vector<2x128xf32>, vector<128x128xf32>, vector<2x128xf32> -> vector<2x128xf32>
    %c0_14 = arith.constant 0 : index
    %c0_15 = arith.constant 0 : index
    %c0_16 = arith.constant 0 : index
    %34 = vector.load %arg4[%c0_14, %c0_15, %c0_16] : memref<2x3x128xf32, #tpu.memory_space<vmem>>, vector<1x3x128xf32>
    %35 = vector.shape_cast %34 : vector<1x3x128xf32> to vector<3x128xf32>
    %36 = vector.extract_strided_slice %35 {offsets = [0, 0], sizes = [2, 128], strides = [1, 1]} : vector<3x128xf32> to vector<2x128xf32>
    %37 = arith.subf %33, %36 : vector<2x128xf32>
    %38 = arith.mulf %37, %37 : vector<2x128xf32>
    %cst_17 = arith.constant 1.000000e+04 : f32
    %39 = vector.broadcast %cst_17 : f32 to vector<2x128xf32>
    %40 = arith.mulf %39, %38 : vector<2x128xf32>
    %cst_18 = arith.constant 1.000000e+04 : f32
    %41 = vector.broadcast %cst_18 : f32 to vector<2x128xf32>
    %42 = arith.addf %38, %41 : vector<2x128xf32>
    %43 = tpu.reciprocal %42 {approx = true} : vector<2x128xf32> -> vector<2x128xf32>
    %44 = arith.mulf %40, %43 : vector<2x128xf32>
    %45 = vector.extract_strided_slice %35 {offsets = [2, 0], sizes = [1, 128], strides = [1, 1]} : vector<3x128xf32> to vector<1x128xf32>
    %cst_19 = arith.constant 1.500000e+03 : f32
    %46 = arith.mulf %cst_19, %7 : f32
    %47 = arith.mulf %46, %46 : f32
    %48 = arith.mulf %45, %45 : vector<1x128xf32>
    %cst_20 = arith.constant 9.99999993E-9 : f32
    %49 = vector.broadcast %cst_20 : f32 to vector<2x128xf32>
    %50 = arith.addf %44, %49 : vector<2x128xf32>
    %51 = vector.broadcast %48 : vector<1x128xf32> to vector<2x128xf32>
    %52 = arith.mulf %51, %50 : vector<2x128xf32>
    %53 = vector.shape_cast %52 : vector<2x128xf32> to vector<1x2x128xf32>
    %cst_21 = arith.constant dense<0.000000e+00> : vector<1xf32>
    %54 = vector.multi_reduction <add>, %53, %cst_21 [1, 2] : vector<1x2x128xf32> to vector<1xf32>
    %55 = vector.shape_cast %54 : vector<1xf32> to vector<1x1x1xf32>
    %56 = vector.extract %55[0, 0, 0] : f32 from vector<1x1x1xf32>
    %57 = arith.mulf %47, %56 : f32
    %cst_22 = arith.constant 0.000000e+00 : f32
    %58 = arith.addf %cst_22, %57 : f32
    %c1_23 = arith.constant 1 : index
    %c0_24 = arith.constant 0 : index
    %59 = memref.load %arg1[%c1_23, %c0_24] : memref<2x8xf32, #tpu.memory_space<smem>>
    %c1_25 = arith.constant 1 : index
    %c1_26 = arith.constant 1 : index
    %60 = memref.load %arg1[%c1_25, %c1_26] : memref<2x8xf32, #tpu.memory_space<smem>>
    %c1_27 = arith.constant 1 : index
    %c2_28 = arith.constant 2 : index
    %61 = memref.load %arg1[%c1_27, %c2_28] : memref<2x8xf32, #tpu.memory_space<smem>>
    %c1_29 = arith.constant 1 : index
    %c3_30 = arith.constant 3 : index
    %62 = memref.load %arg1[%c1_29, %c3_30] : memref<2x8xf32, #tpu.memory_space<smem>>
    %c1_31 = arith.constant 1 : index
    %c4_32 = arith.constant 4 : index
    %63 = memref.load %arg1[%c1_31, %c4_32] : memref<2x8xf32, #tpu.memory_space<smem>>
    %c1_33 = arith.constant 1 : index
    %c5_34 = arith.constant 5 : index
    %64 = memref.load %arg1[%c1_33, %c5_34] : memref<2x8xf32, #tpu.memory_space<smem>>
    %c1_35 = arith.constant 1 : index
    %c6_36 = arith.constant 6 : index
    %65 = memref.load %arg1[%c1_35, %c6_36] : memref<2x8xf32, #tpu.memory_space<smem>>
    %c1_37 = arith.constant 1 : index
    %c7_38 = arith.constant 7 : index
    %66 = memref.load %arg1[%c1_37, %c7_38] : memref<2x8xf32, #tpu.memory_space<smem>>
    %c1_39 = arith.constant 1 : index
    %c0_40 = arith.constant 0 : index
    %c0_41 = arith.constant 0 : index
    %67 = vector.load %arg2[%c1_39, %c0_40, %c0_41] : memref<2x3x128xf32, #tpu.memory_space<vmem>>, vector<1x3x128xf32>
    %68 = vector.shape_cast %67 : vector<1x3x128xf32> to vector<3x128xf32>
    %69 = vector.extract_strided_slice %68 {offsets = [2, 0], sizes = [1, 128], strides = [1, 1]} : vector<3x128xf32> to vector<1x128xf32>
    %70 = vector.broadcast %65 : f32 to vector<1x128xf32>
    %71 = arith.addf %69, %70 : vector<1x128xf32>
    %72 = tpu.reciprocal %71 {approx = true} : vector<1x128xf32> -> vector<1x128xf32>
    %73 = vector.extract_strided_slice %68 {offsets = [0, 0], sizes = [1, 128], strides = [1, 1]} : vector<3x128xf32> to vector<1x128xf32>
    %74 = vector.broadcast %63 : f32 to vector<1x128xf32>
    %75 = arith.addf %73, %74 : vector<1x128xf32>
    %76 = vector.broadcast %59 : f32 to vector<1x128xf32>
    %77 = arith.mulf %76, %75 : vector<1x128xf32>
    %78 = arith.mulf %77, %72 : vector<1x128xf32>
    %79 = vector.broadcast %61 : f32 to vector<1x128xf32>
    %80 = arith.addf %78, %79 : vector<1x128xf32>
    %81 = vector.extract_strided_slice %68 {offsets = [1, 0], sizes = [1, 128], strides = [1, 1]} : vector<3x128xf32> to vector<1x128xf32>
    %82 = vector.broadcast %64 : f32 to vector<1x128xf32>
    %83 = arith.addf %81, %82 : vector<1x128xf32>
    %84 = vector.broadcast %60 : f32 to vector<1x128xf32>
    %85 = arith.mulf %84, %83 : vector<1x128xf32>
    %86 = arith.mulf %85, %72 : vector<1x128xf32>
    %87 = vector.broadcast %62 : f32 to vector<1x128xf32>
    %88 = arith.addf %86, %87 : vector<1x128xf32>
    %89 = tpu.concatenate %80, %88 in 0 : vector<1x128xf32>, vector<1x128xf32> -> vector<2x128xf32>
    %c1_42 = arith.constant 1 : index
    %c0_43 = arith.constant 0 : index
    %c0_44 = arith.constant 0 : index
    %90 = vector.load %arg3[%c1_42, %c0_43, %c0_44] : memref<2x128x128xf32, #tpu.memory_space<vmem>>, vector<1x128x128xf32>
    %91 = vector.shape_cast %90 : vector<1x128x128xf32> to vector<128x128xf32>
    %cst_45 = arith.constant dense<0.000000e+00> : vector<2x128xf32>
    %92 = tpu.matmul %89, %91, %cst_45 {dimension_numbers = #tpu.dot_dimension_numbers<[1], [0], [0], [1], [0, 0, 1, 1], [], []>} : vector<2x128xf32>, vector<128x128xf32>, vector<2x128xf32> -> vector<2x128xf32>
    %c1_46 = arith.constant 1 : index
    %c0_47 = arith.constant 0 : index
    %c0_48 = arith.constant 0 : index
    %93 = vector.load %arg4[%c1_46, %c0_47, %c0_48] : memref<2x3x128xf32, #tpu.memory_space<vmem>>, vector<1x3x128xf32>
    %94 = vector.shape_cast %93 : vector<1x3x128xf32> to vector<3x128xf32>
    %95 = vector.extract_strided_slice %94 {offsets = [0, 0], sizes = [2, 128], strides = [1, 1]} : vector<3x128xf32> to vector<2x128xf32>
    %96 = arith.subf %92, %95 : vector<2x128xf32>
    %97 = arith.mulf %96, %96 : vector<2x128xf32>
    %cst_49 = arith.constant 1.000000e+04 : f32
    %98 = vector.broadcast %cst_49 : f32 to vector<2x128xf32>
    %99 = arith.mulf %98, %97 : vector<2x128xf32>
    %cst_50 = arith.constant 1.000000e+04 : f32
    %100 = vector.broadcast %cst_50 : f32 to vector<2x128xf32>
    %101 = arith.addf %97, %100 : vector<2x128xf32>
    %102 = tpu.reciprocal %101 {approx = true} : vector<2x128xf32> -> vector<2x128xf32>
    %103 = arith.mulf %99, %102 : vector<2x128xf32>
    %104 = vector.extract_strided_slice %94 {offsets = [2, 0], sizes = [1, 128], strides = [1, 1]} : vector<3x128xf32> to vector<1x128xf32>
    %cst_51 = arith.constant 1.500000e+03 : f32
    %105 = arith.mulf %cst_51, %66 : f32
    %106 = arith.mulf %105, %105 : f32
    %107 = arith.mulf %104, %104 : vector<1x128xf32>
    %cst_52 = arith.constant 9.99999993E-9 : f32
    %108 = vector.broadcast %cst_52 : f32 to vector<2x128xf32>
    %109 = arith.addf %103, %108 : vector<2x128xf32>
    %110 = vector.broadcast %107 : vector<1x128xf32> to vector<2x128xf32>
    %111 = arith.mulf %110, %109 : vector<2x128xf32>
    %112 = vector.shape_cast %111 : vector<2x128xf32> to vector<1x2x128xf32>
    %cst_53 = arith.constant dense<0.000000e+00> : vector<1xf32>
    %113 = vector.multi_reduction <add>, %112, %cst_53 [1, 2] : vector<1x2x128xf32> to vector<1xf32>
    %114 = vector.shape_cast %113 : vector<1xf32> to vector<1x1x1xf32>
    %115 = vector.extract %114[0, 0, 0] : f32 from vector<1x1x1xf32>
    %116 = arith.mulf %106, %115 : f32
    %117 = arith.addf %58, %116 : f32
    %c0_54 = arith.constant 0 : index
    %c0_55 = arith.constant 0 : index
    %118 = vector.load %arg5[%c0_54, %c0_55] : memref<1x128xf32, #tpu.memory_space<vmem>>, vector<1x128xf32>
    %c0_56 = arith.constant 0 : index
    %c0_57 = arith.constant 0 : index
    %119 = vector.load %arg6[%c0_56, %c0_57] : memref<1x128xf32, #tpu.memory_space<vmem>>, vector<1x128xf32>
    %120 = arith.mulf %118, %118 : vector<1x128xf32>
    %121 = vector.shape_cast %120 : vector<1x128xf32> to vector<1x1x128xf32>
    %cst_58 = arith.constant dense<0.000000e+00> : vector<1xf32>
    %122 = vector.multi_reduction <add>, %121, %cst_58 [1, 2] : vector<1x1x128xf32> to vector<1xf32>
    %123 = vector.shape_cast %122 : vector<1xf32> to vector<1x1x1xf32>
    %124 = vector.extract %123[0, 0, 0] : f32 from vector<1x1x1xf32>
    %cst_59 = arith.constant 1.000000e+00 : f32
    %125 = arith.mulf %124, %cst_59 : f32
    %126 = arith.mulf %119, %119 : vector<1x128xf32>
    %127 = vector.shape_cast %126 : vector<1x128xf32> to vector<1x1x128xf32>
    %cst_60 = arith.constant dense<0.000000e+00> : vector<1xf32>
    %128 = vector.multi_reduction <add>, %127, %cst_60 [1, 2] : vector<1x1x128xf32> to vector<1xf32>
    %129 = vector.shape_cast %128 : vector<1xf32> to vector<1x1x1xf32>
    %130 = vector.extract %129[0, 0, 0] : f32 from vector<1x1x1xf32>
    %cst_61 = arith.constant 2.500000e-01 : f32
    %131 = arith.mulf %130, %cst_61 : f32
    %132 = arith.addf %125, %131 : f32
    %cst_62 = arith.constant 2.000000e+00 : f32
    %133 = arith.mulf %cst_62, %132 : f32
    %134 = arith.addf %117, %133 : f32
    %135 = vector.broadcast %134 : f32 to vector<1x1xf32>
    %c0_63 = arith.constant 0 : index
    %c0_64 = arith.constant 0 : index
    %136 = vector.load %arg7[%c0_63, %c0_64] : memref<1x1xf32, #tpu.memory_space<vmem>>, vector<1x1xf32>
    tpu.vector_store %arg7[%c0_63, %c0_64], %135 {strides = array<i32>} : memref<1x1xf32, #tpu.memory_space<vmem>>, vector<1x1xf32>,
    return
  }
  func.func @transform_0(%arg0: i32) -> (i32, i32) {
    %c0_i32 = arith.constant 0 : i32
    %c0_i32_0 = arith.constant 0 : i32
    %c0_i32_1 = arith.constant 0 : i32
    return %c0_i32, %c0_i32_0 : i32, i32
  }
  func.func @transform_1(%arg0: i32) -> (i32, i32, i32) {
    %c0_i32 = arith.constant 0 : i32
    %c0_i32_0 = arith.constant 0 : i32
    %c0_i32_1 = arith.constant 0 : i32
    %c0_i32_2 = arith.constant 0 : i32
    return %c0_i32, %c0_i32_0, %c0_i32_1 : i32, i32, i32
  }
  func.func @transform_2(%arg0: i32) -> (i32, i32, i32) {
    %c0_i32 = arith.constant 0 : i32
    %c0_i32_0 = arith.constant 0 : i32
    %c0_i32_1 = arith.constant 0 : i32
    %c0_i32_2 = arith.constant 0 : i32
    return %c0_i32, %c0_i32_0, %c0_i32_1 : i32, i32, i32
  }
  func.func @transform_3(%arg0: i32) -> (i32, i32, i32) {
    %c0_i32 = arith.constant 0 : i32
    %c0_i32_0 = arith.constant 0 : i32
    %c0_i32_1 = arith.constant 0 : i32
    %c0_i32_2 = arith.constant 0 : i32
    return %c0_i32, %c0_i32_0, %c0_i32_1 : i32, i32, i32
  }
  func.func @transform_4(%arg0: i32) -> (i32, i32) {
    %c0_i32 = arith.constant 0 : i32
    %c0_i32_0 = arith.constant 0 : i32
    %c0_i32_1 = arith.constant 0 : i32
    return %c0_i32, %c0_i32_0 : i32, i32
  }
  func.func @transform_5(%arg0: i32) -> (i32, i32) {
    %c0_i32 = arith.constant 0 : i32
    %c0_i32_0 = arith.constant 0 : i32
    %c0_i32_1 = arith.constant 0 : i32
    return %c0_i32, %c0_i32_0 : i32, i32
  }
  func.func @transform_6(%arg0: i32) -> (i32, i32) {
    %c0_i32 = arith.constant 0 : i32
    %c0_i32_0 = arith.constant 0 : i32
    %c0_i32_1 = arith.constant 0 : i32
    return %c0_i32, %c0_i32_0 : i32, i32
  }
}

</mosaic_0001>

<llo_original>
// kernel: tpu_custom_call.1
$region0: #{tpu_custom_call.1}
  #allocation0 [shape = 'u32[]', space=smem, size = 0x4, offset = 0x4, fixed_abs, tag = 'smem constant byte address 0x4 - core index']
  #allocation1 [shape = 'u32[144,128]{1,0:T(1,128)}', space=vmem, size = 0x12000, scoped, tag = 'internal scratch']
  %s0 = inlined_call_operand.vmem [shape: f32[2,8], index: 0, kind: input, shape index: {}]
  %s1 = inlined_call_operand.vmem [shape: f32[2,3,128], index: 1, kind: input, shape index: {}]
  %s2 = inlined_call_operand.hbm [shape: f32[2,128,128], index: 2, kind: input, shape index: {}]
  %s3 = inlined_call_operand.vmem [shape: f32[2,3,128], index: 3, kind: input, shape index: {}]
  %s4 = inlined_call_operand.vmem [shape: f32[1,128], index: 4, kind: input, shape index: {}]
  %s5 = inlined_call_operand.vmem [shape: f32[1,128], index: 5, kind: input, shape index: {}]
  %s6 = inlined_call_operand.hbm [shape: f32[1,1], index: 6, kind: output, shape index: {}]
  %s7 = sld [smem:[#allocation0]]
  $region42: #{tpu_custom_call.1} parent=0
    _
  %s9 = ssub.s32 1, %s7
  %s10 = scalar_select 0, %s9, %s7
  $region1: #{tpu_custom_call.1} parent=0
    #allocation2 [shape = 'u8[1024]{0}', space=smem, size = 0x400, scoped, tag = 'input window, operand 0, single buffered']
    #allocation3 [shape = 's32[1]{0}', space=sflag, size = 0x4, scoped, tag = 'scoped memory for tpu_custom_call.1']
    #allocation4 [shape = 's32[1]{0}', space=sflag, size = 0x4, scoped, tag = 'scoped memory for tpu_custom_call.1']
    #allocation5 [shape = 's32[1]{0}', space=sflag, size = 0x4, scoped, tag = 'scoped memory for tpu_custom_call.1']
    #allocation6 [shape = 'u8[131072]{0}', space=vmem, size = 0x20000, scoped, tag = 'input window, operand 2, single buffered']
    #allocation7 [shape = 'u8[512]{0}', space=vmem, size = 0x400, scoped, tag = 'output window, operand 0, single buffered']
    %11 = vsyncpa [#allocation5], 0
    %12 = vsyncpa [#allocation3], 0
    %13 = vsyncpa [#allocation4], 0
    // Predicated region
    $region2: #{tpu_custom_call.1} parent=1 // pred_check
      _
    $region3: #{tpu_custom_call.1} parent=1 // pred_check_branch
      %15 = sbr.rel (0) target = $region5
    $region4: #{tpu_custom_call.1} parent=1 // pred_region
      %s17 = ssub.s32 32, 32
      %18 = vsyncadd [#allocation5], %s17
      %s20 = sshll.u32 %s0, 4
      %s21 = int_to_ptr.vmem [resolvable:$true] %s20
      %23 = dma.vmem_to_smem %s21, 32, [#allocation2], [#allocation5]
    $region5: #{tpu_custom_call.1} parent=1 // pred_fallthru
      _
    // Predicated region
    $region6: #{tpu_custom_call.1} parent=1 // pred_check
      _
    $region7: #{tpu_custom_call.1} parent=1 // pred_check_branch
      %25 = sbr.rel (0) target = $region9
    $region8: #{tpu_custom_call.1} parent=1 // pred_region
      _
    $region9: #{tpu_custom_call.1} parent=1 // pred_fallthru
      _
    // Predicated region
    $region10: #{tpu_custom_call.1} parent=1 // pred_check
      _
    $region11: #{tpu_custom_call.1} parent=1 // pred_check_branch
      %27 = sbr.rel (0) target = $region13
    $region12: #{tpu_custom_call.1} parent=1 // pred_region
      %s29 = ssub.s32 4096, 4096
      %30 = vsyncadd [#allocation3], %s29
      %s31 = sshll.u32 [#allocation6], 4
      %s32 = int_to_ptr.vmem [resolvable:$true] %s31
      %37 = dma.hbm_to_vmem [thread:$0]  %s2, 4096, %s32, [#allocation3], 128, 128, 8
    $region13: #{tpu_custom_call.1} parent=1 // pred_fallthru
      _
    // Predicated region
    $region14: #{tpu_custom_call.1} parent=1 // pred_check
      _
    $region15: #{tpu_custom_call.1} parent=1 // pred_check_branch
      %39 = sbr.rel (0) target = $region17
    $region16: #{tpu_custom_call.1} parent=1 // pred_region
      _
    $region17: #{tpu_custom_call.1} parent=1 // pred_fallthru
      _
    // Predicated region
    $region18: #{tpu_custom_call.1} parent=1 // pred_check
      _
    $region19: #{tpu_custom_call.1} parent=1 // pred_check_branch
      %41 = sbr.rel (0) target = $region21
    $region20: #{tpu_custom_call.1} parent=1 // pred_region
      _
    $region21: #{tpu_custom_call.1} parent=1 // pred_fallthru
      _
    // Predicated region
    $region22: #{tpu_custom_call.1} parent=1 // pred_check
      _
    $region23: #{tpu_custom_call.1} parent=1 // pred_check_branch
      %43 = sbr.rel (0) target = $region25
    $region24: #{tpu_custom_call.1} parent=1 // pred_region
      _
    $region25: #{tpu_custom_call.1} parent=1 // pred_fallthru
      _
    // Predicated region
    $region26: #{tpu_custom_call.1} parent=1 // pred_check
      _
    $region27: #{tpu_custom_call.1} parent=1 // pred_check_branch
      %45 = sbr.rel (0) target = $region29
    $region28: #{tpu_custom_call.1} parent=1 // pred_region
      %46 = dma.done [#allocation5], 32
    $region29: #{tpu_custom_call.1} parent=1 // pred_fallthru
      _
    // Predicated region
    $region30: #{tpu_custom_call.1} parent=1 // pred_check
      _
    $region31: #{tpu_custom_call.1} parent=1 // pred_check_branch
      %48 = sbr.rel (0) target = $region33
    $region32: #{tpu_custom_call.1} parent=1 // pred_region
      %49 = dma.done [#allocation3], 4096
    $region33: #{tpu_custom_call.1} parent=1 // pred_fallthru
      _
    %50 = sfence
    %s51 = sld [smem:[#allocation2]]
    %s52 = sld [smem:[#allocation2 + $0x1]]
    %s53 = sld [smem:[#allocation2 + $0x2]]
    %s54 = sld [smem:[#allocation2 + $0x3]]
    %s55 = sld [smem:[#allocation2 + $0x4]]
    %s56 = sld [smem:[#allocation2 + $0x5]]
    %s57 = sld [smem:[#allocation2 + $0x6]]
    %s58 = sld [smem:[#allocation2 + $0x7]]
    %v59 = vld [vmem:[%s1] sm:$0x7]
    %v60 = vstv %s57
    %v61 = vadd.f32 %v59, %v60
    %v62 = vrcp.pop %v61
    %v63 = vstv %s55
    %v64 = vadd.f32 %v59, %v63
    %v65 = vstv %s51
    %v66 = vmul.f32 %v65, %v64
    %v68 = vrot.slane %v62, 2
    %v70 = vmul.f32 %v66, %v68
    %v71 = vstv %s53
    %v72 = vadd.f32 %v70, %v71
    %v73 = vstv %s56
    %v74 = vadd.f32 %v59, %v73
    %v75 = vstv %s52
    %v76 = vmul.f32 %v75, %v74
    %v77 = vrot.slane %v62, 1
    %v79 = vmul.f32 %v76, %v77
    %v80 = vstv %s54
    %v81 = vadd.f32 %v79, %v80
    %vm82 = vcmask 1040384
    %v83 = vsel %vm82, %v72, %v81
    %v84 = vld [vmem:[#allocation6] sm:$0xff]
    %v85 = vld [vmem:[#allocation6 + $0x8] sm:$0xff]
    %v86 = vld [vmem:[#allocation6 + $0x10] sm:$0xff]
    %v87 = vld [vmem:[#allocation6 + $0x18] sm:$0xff]
    %v88 = vld [vmem:[#allocation6 + $0x20] sm:$0xff]
    %v89 = vld [vmem:[#allocation6 + $0x28] sm:$0xff]
    %v90 = vld [vmem:[#allocation6 + $0x30] sm:$0xff]
    %v91 = vld [vmem:[#allocation6 + $0x38] sm:$0xff]
    %v92 = vld [vmem:[#allocation6 + $0x40] sm:$0xff]
    %v93 = vld [vmem:[#allocation6 + $0x48] sm:$0xff]
    %v94 = vld [vmem:[#allocation6 + $0x50] sm:$0xff]
    %v95 = vld [vmem:[#allocation6 + $0x58] sm:$0xff]
    %v96 = vld [vmem:[#allocation6 + $0x60] sm:$0xff]
    %v97 = vld [vmem:[#allocation6 + $0x68] sm:$0xff]
    %v98 = vld [vmem:[#allocation6 + $0x70] sm:$0xff]
    %v99 = vld [vmem:[#allocation6 + $0x78] sm:$0xff]
    %100 = vmatprep.subr.mxu0 0.0
    %101 = vmatpush1.msra.mxu0 %v84
    %102 = vmatprep.subr.mxu0 0.0
    %103 = vmatpush1.msra.mxu0 %v85
    %104 = vmatprep.subr.mxu0 0.0
    %105 = vmatpush1.msra.mxu0 %v86
    %106 = vmatprep.subr.mxu0 0.0
    %107 = vmatpush1.msra.mxu0 %v87
    %108 = vmatprep.subr.mxu0 0.0
    %109 = vmatpush1.msra.mxu0 %v88
    %110 = vmatprep.subr.mxu0 0.0
    %111 = vmatpush1.msra.mxu0 %v89
    %112 = vmatprep.subr.mxu0 0.0
    %113 = vmatpush1.msra.mxu0 %v90
    %114 = vmatprep.subr.mxu0 0.0
    %115 = vmatpush1.msra.mxu0 %v91
    %116 = vmatprep.subr.mxu0 0.0
    %117 = vmatpush1.msra.mxu0 %v92
    %118 = vmatprep.subr.mxu0 0.0
    %119 = vmatpush1.msra.mxu0 %v93
    %120 = vmatprep.subr.mxu0 0.0
    %121 = vmatpush1.msra.mxu0 %v94
    %122 = vmatprep.subr.mxu0 0.0
    %123 = vmatpush1.msra.mxu0 %v95
    %124 = vmatprep.subr.mxu0 0.0
    %125 = vmatpush1.msra.mxu0 %v96
    %126 = vmatprep.subr.mxu0 0.0
    %127 = vmatpush1.msra.mxu0 %v97
    %128 = vmatprep.subr.mxu0 0.0
    %129 = vmatpush1.msra.mxu0 %v98
    %130 = vmatprep.subr.mxu0 0.0
    %131 = vmatpush1.msra.mxu0 %v99
    %132 = vmatprep.subr.mxu0 0.0
    %133 = vmatpush1.msra.mxu0 0.0
    %134 = vmatprep.subr.mxu0 0.0
    %135 = vmatpush1.msra.mxu0 0.0
    %136 = vmatprep.subr.mxu0 0.0
    %137 = vmatpush1.msra.mxu0 0.0
    %138 = vmatprep.subr.mxu0 0.0
    %139 = vmatpush1.msra.mxu0 0.0
    %140 = vmatprep.subr.mxu0 0.0
    %141 = vmatpush1.msra.mxu0 0.0
    %142 = vmatprep.subr.mxu0 0.0
    %143 = vmatpush1.msra.mxu0 0.0
    %144 = vmatprep.subr.mxu0 0.0
    %145 = vmatpush1.msra.mxu0 0.0
    %146 = vmatprep.subr.mxu0 0.0
    %147 = vmatpush1.msra.mxu0 0.0
    %148 = vmatprep.subr.mxu0 0.0
    %149 = vmatpush1.msra.mxu0 0.0
    %150 = vmatprep.subr.mxu0 0.0
    %151 = vmatpush1.msra.mxu0 0.0
    %152 = vmatprep.subr.mxu0 0.0
    %153 = vmatpush1.msra.mxu0 0.0
    %154 = vmatprep.subr.mxu0 0.0
    %155 = vmatpush1.msra.mxu0 0.0
    %156 = vmatprep.subr.mxu0 0.0
    %157 = vmatpush1.msra.mxu0 0.0
    %158 = vmatprep.subr.mxu0 0.0
    %159 = vmatpush1.msra.mxu0 0.0
    %160 = vmatprep.subr.mxu0 0.0
    %161 = vmatpush1.msra.mxu0 0.0
    %162 = vmatprep.subr.mxu0 0.0
    %163 = vmatpush1.msra.mxu0 0.0
    %164 = vmatprep.mubr.f32.mxu0 0.0
    %165 = vmatmul.mubr.f32.gmra.mrb[0].mxu0 %v83
    %v166 = vpop.f32.mrb[0].mxu0
    %v167 = vadd.f32 0.0, %v166
    %v168 = vpop.f32.mrb[0].mxu0
    %169 = vdwg.mxu0
    %v170 = vld [vmem:[%s3] sm:$0x7]
    %v171 = vsub.f32 %v167, %v170
    %v172 = vmul.f32 %v171, %v171
    %v173 = vmul.f32 %v172, 10000.0
    %v174 = vadd.f32 %v172, 10000.0
    %v175 = vrcp.pop %v174
    %v176 = vmul.f32 %v173, %v175
    %s177 = smul.f32 %s58, 1500.0
    %s178 = smul.f32 %s177, %s177
    %v179 = vmul.f32 %v170, %v170
    %v180 = vadd.f32 %v176, 1e-08
    %v181 = vlaneseq
    %v182 = vshrl.u32 %v181, 7
    %v183 = vsub.s32 2, %v182
    %v184 = vrot.slane %v179, %v183
    %v185 = vmul.f32 %v184, %v180
    %vm186 = vcmask 1041408
    %v187 = vsel %vm186, %v185, 0.0
    %188 = vadd.xlane.f32.xlu0 %v187
    %v189 = vpop.xlane.xlu0 %188
    %v190 = vrot.slane %v189, 4
    %v191 = vadd.f32 %v189, %v190
    %v192 = vrot.slane %v191, 2
    %v193 = vadd.f32 %v191, %v192
    %v194 = vrot.slane %v193, 1
    %v195 = vadd.f32 %v193, %v194
    %s196 = vtos %v195
    %s197 = smul.f32 %s178, %s196
    %s198 = sadd.f32 %s197, 0.0
    %s199 = sld [smem:[#allocation2 + $0x80]]
    %s200 = sld [smem:[#allocation2 + $0x81]]
    %s201 = sld [smem:[#allocation2 + $0x82]]
    %s202 = sld [smem:[#allocation2 + $0x83]]
    %s203 = sld [smem:[#allocation2 + $0x84]]
    %s204 = sld [smem:[#allocation2 + $0x85]]
    %s205 = sld [smem:[#allocation2 + $0x86]]
    %s206 = sld [smem:[#allocation2 + $0x87]]
    %s207 = scalar_lea.vmem %s1, 4
    %v208 = vld [vmem:[%s207] sm:$0x7]
    %v209 = vstv %s205
    %v210 = vadd.f32 %v208, %v209
    %v211 = vrcp.pop %v210
    %v212 = vstv %s203
    %v213 = vadd.f32 %v208, %v212
    %v214 = vstv %s199
    %v215 = vmul.f32 %v214, %v213
    %v217 = vrot.slane %v211, 2
    %v219 = vmul.f32 %v215, %v217
    %v220 = vstv %s201
    %v221 = vadd.f32 %v219, %v220
    %v222 = vstv %s204
    %v223 = vadd.f32 %v208, %v222
    %v224 = vstv %s200
    %v225 = vmul.f32 %v224, %v223
    %v226 = vrot.slane %v211, 1
    %v228 = vmul.f32 %v225, %v226
    %v229 = vstv %s202
    %v230 = vadd.f32 %v228, %v229
    %v231 = vsel %vm82, %v221, %v230
    %s232 = scalar_lea.vmem [#allocation6], 128
    %v233 = vld [vmem:[%s232] sm:$0xff]
    %v234 = vld [vmem:[%s232 + $0x8] sm:$0xff]
    %v235 = vld [vmem:[%s232 + $0x10] sm:$0xff]
    %v236 = vld [vmem:[%s232 + $0x18] sm:$0xff]
    %v237 = vld [vmem:[%s232 + $0x20] sm:$0xff]
    %v238 = vld [vmem:[%s232 + $0x28] sm:$0xff]
    %v239 = vld [vmem:[%s232 + $0x30] sm:$0xff]
    %v240 = vld [vmem:[%s232 + $0x38] sm:$0xff]
    %v241 = vld [vmem:[%s232 + $0x40] sm:$0xff]
    %v242 = vld [vmem:[%s232 + $0x48] sm:$0xff]
    %v243 = vld [vmem:[%s232 + $0x50] sm:$0xff]
    %v244 = vld [vmem:[%s232 + $0x58] sm:$0xff]
    %v245 = vld [vmem:[%s232 + $0x60] sm:$0xff]
    %v246 = vld [vmem:[%s232 + $0x68] sm:$0xff]
    %v247 = vld [vmem:[%s232 + $0x70] sm:$0xff]
    %v248 = vld [vmem:[%s232 + $0x78] sm:$0xff]
    %249 = vmatprep.subr.mxu0 0.0
    %250 = vmatpush1.msra.mxu0 %v233
    %251 = vmatprep.subr.mxu0 0.0
    %252 = vmatpush1.msra.mxu0 %v234
    %253 = vmatprep.subr.mxu0 0.0
    %254 = vmatpush1.msra.mxu0 %v235
    %255 = vmatprep.subr.mxu0 0.0
    %256 = vmatpush1.msra.mxu0 %v236
    %257 = vmatprep.subr.mxu0 0.0
    %258 = vmatpush1.msra.mxu0 %v237
    %259 = vmatprep.subr.mxu0 0.0
    %260 = vmatpush1.msra.mxu0 %v238
    %261 = vmatprep.subr.mxu0 0.0
    %262 = vmatpush1.msra.mxu0 %v239
    %263 = vmatprep.subr.mxu0 0.0
    %264 = vmatpush1.msra.mxu0 %v240
    %265 = vmatprep.subr.mxu0 0.0
    %266 = vmatpush1.msra.mxu0 %v241
    %267 = vmatprep.subr.mxu0 0.0
    %268 = vmatpush1.msra.mxu0 %v242
    %269 = vmatprep.subr.mxu0 0.0
    %270 = vmatpush1.msra.mxu0 %v243
    %271 = vmatprep.subr.mxu0 0.0
    %272 = vmatpush1.msra.mxu0 %v244
    %273 = vmatprep.subr.mxu0 0.0
    %274 = vmatpush1.msra.mxu0 %v245
    %275 = vmatprep.subr.mxu0 0.0
    %276 = vmatpush1.msra.mxu0 %v246
    %277 = vmatprep.subr.mxu0 0.0
    %278 = vmatpush1.msra.mxu0 %v247
    %279 = vmatprep.subr.mxu0 0.0
    %280 = vmatpush1.msra.mxu0 %v248
    %281 = vmatprep.subr.mxu0 0.0
    %282 = vmatpush1.msra.mxu0 0.0
    %283 = vmatprep.subr.mxu0 0.0
    %284 = vmatpush1.msra.mxu0 0.0
    %285 = vmatprep.subr.mxu0 0.0
    %286 = vmatpush1.msra.mxu0 0.0
    %287 = vmatprep.subr.mxu0 0.0
    %288 = vmatpush1.msra.mxu0 0.0
    %289 = vmatprep.subr.mxu0 0.0
    %290 = vmatpush1.msra.mxu0 0.0
    %291 = vmatprep.subr.mxu0 0.0
    %292 = vmatpush1.msra.mxu0 0.0
    %293 = vmatprep.subr.mxu0 0.0
    %294 = vmatpush1.msra.mxu0 0.0
    %295 = vmatprep.subr.mxu0 0.0
    %296 = vmatpush1.msra.mxu0 0.0
    %297 = vmatprep.subr.mxu0 0.0
    %298 = vmatpush1.msra.mxu0 0.0
    %299 = vmatprep.subr.mxu0 0.0
    %300 = vmatpush1.msra.mxu0 0.0
    %301 = vmatprep.subr.mxu0 0.0
    %302 = vmatpush1.msra.mxu0 0.0
    %303 = vmatprep.subr.mxu0 0.0
    %304 = vmatpush1.msra.mxu0 0.0
    %305 = vmatprep.subr.mxu0 0.0
    %306 = vmatpush1.msra.mxu0 0.0
    %307 = vmatprep.subr.mxu0 0.0
    %308 = vmatpush1.msra.mxu0 0.0
    %309 = vmatprep.subr.mxu0 0.0
    %310 = vmatpush1.msra.mxu0 0.0
    %311 = vmatprep.subr.mxu0 0.0
    %312 = vmatpush1.msra.mxu0 0.0
    %313 = vmatprep.mubr.f32.mxu0 0.0
    %314 = vmatmul.mubr.f32.gmra.mrb[0].mxu0 %v231
    %v315 = vpop.f32.mrb[0].mxu0
    %v316 = vadd.f32 0.0, %v315
    %v317 = vpop.f32.mrb[0].mxu0
    %318 = vdwg.mxu0
    %s319 = scalar_lea.vmem %s3, 4
    %v320 = vld [vmem:[%s319] sm:$0x7]
    %v321 = vsub.f32 %v316, %v320
    %v322 = vmul.f32 %v321, %v321
    %v323 = vmul.f32 %v322, 10000.0
    %v324 = vadd.f32 %v322, 10000.0
    %v325 = vrcp.pop %v324
    %v326 = vmul.f32 %v323, %v325
    %s327 = smul.f32 %s206, 1500.0
    %s328 = smul.f32 %s327, %s327
    %v329 = vmul.f32 %v320, %v320
    %v330 = vadd.f32 %v326, 1e-08
    %v331 = vlaneseq
    %v332 = vshrl.u32 %v331, 7
    %v333 = vsub.s32 2, %v332
    %v334 = vrot.slane %v329, %v333
    %v335 = vmul.f32 %v334, %v330
    %v336 = vsel %vm186, %v335, 0.0
    %337 = vadd.xlane.f32.xlu0 %v336
    %v338 = vpop.xlane.xlu0 %337
    %v339 = vrot.slane %v338, 4
    %v340 = vadd.f32 %v338, %v339
    %v341 = vrot.slane %v340, 2
    %v342 = vadd.f32 %v340, %v341
    %v343 = vrot.slane %v342, 1
    %v344 = vadd.f32 %v342, %v343
    %s345 = vtos %v344
    %s346 = smul.f32 %s328, %s345
    %s347 = sadd.f32 %s198, %s346
    %v348 = vld [vmem:[%s4] sm:$0x1]
    %v349 = vld [vmem:[%s5] sm:$0x1]
    %v350 = vmul.f32 %v348, %v348
    %v351 = vsel %vm82, %v350, 0.0
    %352 = vadd.xlane.f32.xlu0 %v351
    %v353 = vpop.xlane.xlu0 %352
    %v354 = vrot.slane %v353, 4
    %v355 = vadd.f32 %v353, %v354
    %v356 = vrot.slane %v355, 2
    %v357 = vadd.f32 %v355, %v356
    %v358 = vrot.slane %v357, 1
    %v359 = vadd.f32 %v357, %v358
    %s360 = vtos %v359
    %v361 = vmul.f32 %v349, %v349
    %v362 = vsel %vm82, %v361, 0.0
    %363 = vadd.xlane.f32.xlu0 %v362
    %v364 = vpop.xlane.xlu0 %363
    %v365 = vrot.slane %v364, 4
    %v366 = vadd.f32 %v364, %v365
    %v367 = vrot.slane %v366, 2
    %v368 = vadd.f32 %v366, %v367
    %v369 = vrot.slane %v368, 1
    %v370 = vadd.f32 %v368, %v369
    %s371 = vtos %v370
    %s372 = smul.f32 %s371, 0.25
    %s373 = sadd.f32 %s360, %s372
    %s374 = smul.f32 %s373, 2.0
    %s375 = sadd.f32 %s347, %s374
    %v376 = vstv %s375
    %vm377 = vcmask 0
    %378 = vst.msk [vmem:[#allocation7] sm:$0x1] %vm377, %v376
    // Predicated region
    $region34: #{tpu_custom_call.1} parent=1 // pred_check
      _
    $region35: #{tpu_custom_call.1} parent=1 // pred_check_branch
      %380 = sbr.rel (0) target = $region37
    $region36: #{tpu_custom_call.1} parent=1 // pred_region
      %s382 = ssub.s32 16, 16
      %383 = vsyncadd [#allocation4], %s382
      %s385 = sshll.u32 [#allocation7], 4
      %s386 = int_to_ptr.vmem [resolvable:$true] %s385
      %388 = dma.vmem_to_hbm [thread:$0]  %s386, 16, %s6, [#allocation4]
    $region37: #{tpu_custom_call.1} parent=1 // pred_fallthru
      _
    // Predicated region
    $region38: #{tpu_custom_call.1} parent=1 // pred_check
      _
    $region39: #{tpu_custom_call.1} parent=1 // pred_check_branch
      %390 = sbr.rel (0) target = $region41
    $region40: #{tpu_custom_call.1} parent=1 // pred_region
      %391 = dma.done [#allocation4], 16
    $region41: #{tpu_custom_call.1} parent=1 // pred_fallthru
      _
    %392 = vsyncpa [#allocation3], 1
    %393 = vsyncpa [#allocation4], 1
    %394 = vsyncpa [#allocation5], 1

</llo_original>
